<compile_context>
chip_gen: v7x
topology: tpu7x:2x2x1
jax: 0.10.0
libtpu: 0.0.40
codegen_flags: <defaults>
</compile_context>

<pallas_src>
import functools

import numpy as np
import jax
import jax.numpy as jnp
from jax import lax
from jax.experimental import pallas as pl
from jax.experimental.pallas import tpu as pltpu

CIN, COUT, K = 3, 3, 3


def make_gaussian(size=3, fwhm=1):
    """Same as measurement.makeGaussian."""
    x = np.arange(0, size, 1, dtype=np.float32)
    y = x[:, np.newaxis]
    x0 = y0 = size // 2
    return np.exp(-4 * np.log(2) * ((x - x0) ** 2 + (y - y0) ** 2) / fwhm ** 2)


def prepare_measurement_params(weight, bias):
    """One-time, host-side parameter validation + tap extraction.

    Kept OUT of measurement_forward so the forward pass never blocks on a
    device sync. Validates the structure that makes the factorized /
    symmetry-grouped kernel valid:
      * weight[o, c, :, :] == weight[0, 0, :, :] for every (o, c)
      * the 3x3 tap set is symmetric (4 equal edge taps, 4 equal corner taps)
    """
    w = np.asarray(weight, dtype=np.float32)
    assert w.shape == (COUT, CIN, K, K)
    g = w[0, 0]
    assert np.allclose(w, np.broadcast_to(g, w.shape)), (
        "conv weight is not a broadcast gaussian; factorized kernel invalid")
    edges = np.array([g[0, 1], g[1, 0], g[1, 2], g[2, 1]], dtype=np.float32)
    corners = np.array([g[0, 0], g[0, 2], g[2, 0], g[2, 2]], dtype=np.float32)
    assert np.allclose(edges, edges[0]) and np.allclose(corners, corners[0]), (
        "gaussian taps are not symmetric; tap-grouped kernel invalid")
    taps = jnp.asarray([float(g[1, 1]), float(edges[0]), float(corners[0])],
                       dtype=jnp.float32)
    return taps, jnp.asarray(bias, dtype=jnp.float32)


def conv3x3_kernel(taps_ref, bias_ref, masks_ref, x_ref, o_ref, *, H, W):
    """One batch block, fully lane-dense.

    taps_ref : (3,)               f32 SMEM  -- [center, edge, corner] taps
    bias_ref : (COUT,)            f32 SMEM  -- conv bias
    masks_ref: (4, H*W)           f32 VMEM  -- {0,1} source masks (row0, rowH-1,
                                               col0, colW-1 zeroed respectively)
    x_ref    : (Nb, CIN*H*W)      f32 VMEM  -- flattened input block
    o_ref    : (Nb, COUT*H*W)     f32 VMEM  -- flattened output block
    """
    HW = H * W

    def shift(v, delta):
        # y[p] = v[(p + delta) mod HW]; the wrap lanes are zeroed by the
        # source masks applied before the roll. pltpu.roll == jnp.roll.
        return pltpu.roll(v, (-delta) % HW, axis=1)

    # Channel sum -- valid because weight[o, c, :, :] == g for every (o, c).
    s = (x_ref[:, 0 * HW:1 * HW]
         + x_ref[:, 1 * HW:2 * HW]
         + x_ref[:, 2 * HW:3 * HW])

    m_row0 = masks_ref[0:1, :]   # 0 where row == 0     (source mask for "down")
    m_rowH = masks_ref[1:2, :]   # 0 where row == H-1   (source mask for "up")
    m_col0 = masks_ref[2:3, :]   # 0 where col == 0     (source mask for +1 shift)
    m_colW = masks_ref[3:4, :]   # 0 where col == W-1   (source mask for -1 shift)

    # Shifted-neighbor sums in flattened lane space (rolls go to the XLU).
    down = shift(s * m_row0, W)     # x[i+1, j]
    up = shift(s * m_rowH, -W)      # x[i-1, j]
    vert = up + down
    edge_sum = vert + shift(s * m_col0, 1) + shift(s * m_colW, -1)
    corner_sum = shift(vert * m_col0, 1) + shift(vert * m_colW, -1)

    # Gaussian tap symmetry: 3 multiplies instead of 9.
    acc = (taps_ref[0] * s
           + taps_ref[1] * edge_sum
           + taps_ref[2] * corner_sum)

    # Broadcast the single conv result to all output channels (+ bias).
    # Stores are lane-aligned (offsets are multiples of 128) and unmasked.
    for co in range(COUT):
        o_ref[:, co * HW:(co + 1) * HW] = acc + bias_ref[co]


def _round_up(x, m):
    return (x + m - 1) // m * m


def _device_kind():
    try:
        return jax.devices()[0].device_kind.lower()
    except Exception:  # pragma: no cover - defensive
        return ""


def _pick_batch_block(N, lane_elems):
    """Batch-block rows, with (8,128)-padded double-buffered VMEM accounting.

    Returns (nb, padded_footprint_bytes). nb is a multiple of 8 (or == N when
    N <= 8) so the block's second-to-last dim satisfies the (8,128) rule.
    """
    kind = _device_kind()
    if "v7" in kind:        # 64 MiB physical / 32 MiB scoped default, 2 TCs
        budget, cap_two_steps = 24 << 20, True
    elif "v6" in kind:      # 128 MiB VMEM, single TensorCore
        budget, cap_two_steps = 64 << 20, False
    elif "v5" in kind:      # 128 MiB physical, 16 MiB scoped default, 1 TC
        budget, cap_two_steps = 48 << 20, False
    else:                   # unknown: conservative (v7x-safe) settings
        budget, cap_two_steps = 24 << 20, True

    # Per image: (input + output) blocks, double-buffered, f32, lane dim
    # padded to a multiple of 128 (sublane padding handled via round_up(nb,8)).
    per_image = 2 * 2 * 4 * _round_up(lane_elems, 128)

    if N <= 8:
        nb = N                                  # block dim == full array dim
    else:
        nb = max(8, (budget // per_image) // 8 * 8)
        nb = min(nb, _round_up(N, 8))
        if cap_two_steps:
            # keep >= 2 grid steps so both v7x TensorCores get work
            nb = min(nb, max(8, (N // 2) // 8 * 8))

    footprint = per_image * _round_up(nb, 8)
    return int(nb), int(footprint)


def measurement_forward(x, taps, bias):
    """x: (N, 3, H, W) f32, taps: (3,) f32 [center, edge, corner], bias: (3,) f32."""
    N, C, H, W = x.shape
    assert C == CIN
    HW = H * W
    lane = CIN * HW

    # {0,1} source masks for the flattened-lane shifted-roll convolution.
    idx = np.arange(HW)
    row, col = idx // W, idx % W
    masks = jnp.asarray(np.stack([row != 0, row != H - 1,
                                  col != 0, col != W - 1]).astype(np.float32))

    nb, footprint = _pick_batch_block(N, lane)
    masks_bytes = 2 * _round_up(4, 8) * _round_up(HW, 128) * 4
    vmem_limit = max(footprint + masks_bytes + (4 << 20), 16 << 20)

    # Free contiguous reshapes: present lane-dense (N, 3*H*W) slabs to Pallas.
    x_flat = x.reshape(N, lane)
    kernel = functools.partial(conv3x3_kernel, H=H, W=W)

    out_flat = pl.pallas_call(
        kernel,
        out_shape=jax.ShapeDtypeStruct((N, COUT * HW), jnp.float32),
        grid_spec=pltpu.PrefetchScalarGridSpec(
            num_scalar_prefetch=0,
            grid=(pl.cdiv(N, nb),),                         # ragged last block OK
            in_specs=[
                pl.BlockSpec(memory_space=pltpu.SMEM),      # 3 gaussian taps
                pl.BlockSpec(memory_space=pltpu.SMEM),      # bias scalars
                pl.BlockSpec((4, HW), lambda n: (0, 0)),    # lane masks
                pl.BlockSpec((nb, lane), lambda n: (n, 0)),  # input block
            ],
            out_specs=pl.BlockSpec((nb, COUT * HW), lambda n: (n, 0)),
        ),
        compiler_params=pltpu.CompilerParams(
            dimension_semantics=("parallel",),
            vmem_limit_bytes=int(vmem_limit)),
    )(taps, bias, masks, x_flat)
    return out_flat.reshape(N, COUT, H, W)


if __name__ == "__main__":
    key = jax.random.PRNGKey(0)
    k_x, k_b = jax.random.split(key)

    N, H, W = 2, 16, 16
    x = jax.random.normal(k_x, (N, CIN, H, W), dtype=jnp.float32)

    # weight[o, c, :, :] = g  (broadcasted copy_ of the stacked gaussian)
    g = make_gaussian(3, 1)
    weight = jnp.asarray(np.broadcast_to(g, (COUT, CIN, K, K)).copy(),
                         dtype=jnp.float32)

    # deterministic stand-in for the default nn.Conv2d bias init:
    # U(-1/sqrt(fan_in), 1/sqrt(fan_in)), fan_in = CIN*K*K = 27
    bound = 1.0 / np.sqrt(CIN * K * K)
    bias = jax.random.uniform(k_b, (COUT,), minval=-bound, maxval=bound,
                              dtype=jnp.float32)

    # One-time parameter prep (host-side checks live here, not in the forward).
    taps, bias_p = prepare_measurement_params(weight, bias)

    fwd = jax.jit(measurement_forward)
    out = jax.block_until_ready(fwd(x, taps, bias_p))

    # reference check against XLA conv (NCHW / OIHW)
    ref = lax.conv_general_dilated(
        x, weight, window_strides=(1, 1), padding=((1, 1), (1, 1)),
        dimension_numbers=("NCHW", "OIHW", "NCHW"),
    ) + bias[None, :, None, None]
    assert out.shape == (N, COUT, H, W)
    assert jnp.allclose(out, ref, atol=1e-4, rtol=1e-5), "mismatch vs reference conv"

    # TODO(synk): F.normalize(x, p=2, dim=2) in the original forward is
    # discarded (result never assigned), so it is intentionally not implemented.
    print("KERNEL_OK")
</pallas_src>

<mosaic_0001>
module attributes {stable_mosaic.version = 11 : i64} {
  func.func @conv3x3_kernel(%arg0: i32, %arg1: memref<3xf32, #tpu.memory_space<smem>>, %arg2: memref<3xf32, #tpu.memory_space<smem>>, %arg3: memref<4x256xf32, #tpu.memory_space<vmem>>, %arg4: memref<2x768xf32, #tpu.memory_space<vmem>>, %arg5: memref<2x768xf32, #tpu.memory_space<vmem>>) attributes {dimension_semantics = [#tpu.dimension_semantics<parallel>], iteration_bounds = array<i64: 1>, scalar_prefetch = 0 : i64, scratch_operands = 0 : i64, tpu.core_type = #tpu.core_type<tc>, window_params = [{transform_indices = @transform_0, window_bounds = array<i64: 3>}, {transform_indices = @transform_1, window_bounds = array<i64: 3>}, {pipeline_mode = #tpu.pipeline_mode<synchronous>, transform_indices = @transform_2, window_bounds = array<i64: 4, 256>}, {transform_indices = @transform_3, window_bounds = array<i64: 2, 768>}, {transform_indices = @transform_4, window_bounds = array<i64: 2, 768>}]} {
    %c0 = arith.constant 0 : index
    %c0_0 = arith.constant 0 : index
    %0 = vector.load %arg4[%c0, %c0_0] : memref<2x768xf32, #tpu.memory_space<vmem>>, vector<2x256xf32>
    %c0_1 = arith.constant 0 : index
    %c256 = arith.constant 256 : index
    %1 = vector.load %arg4[%c0_1, %c256] : memref<2x768xf32, #tpu.memory_space<vmem>>, vector<2x256xf32>
    %2 = arith.addf %0, %1 : vector<2x256xf32>
    %c0_2 = arith.constant 0 : index
    %c512 = arith.constant 512 : index
    %3 = vector.load %arg4[%c0_2, %c512] : memref<2x768xf32, #tpu.memory_space<vmem>>, vector<2x256xf32>
    %4 = arith.addf %2, %3 : vector<2x256xf32>
    %c0_3 = arith.constant 0 : index
    %c0_4 = arith.constant 0 : index
    %5 = vector.load %arg3[%c0_3, %c0_4] : memref<4x256xf32, #tpu.memory_space<vmem>>, vector<1x256xf32>
    %c1 = arith.constant 1 : index
    %c0_5 = arith.constant 0 : index
    %6 = vector.load %arg3[%c1, %c0_5] : memref<4x256xf32, #tpu.memory_space<vmem>>, vector<1x256xf32>
    %c2 = arith.constant 2 : index
    %c0_6 = arith.constant 0 : index
    %7 = vector.load %arg3[%c2, %c0_6] : memref<4x256xf32, #tpu.memory_space<vmem>>, vector<1x256xf32>
    %c3 = arith.constant 3 : index
    %c0_7 = arith.constant 0 : index
    %8 = vector.load %arg3[%c3, %c0_7] : memref<4x256xf32, #tpu.memory_space<vmem>>, vector<1x256xf32>
    %9 = vector.broadcast %5 : vector<1x256xf32> to vector<2x256xf32>
    %10 = arith.mulf %4, %9 : vector<2x256xf32>
    %c240_i32 = arith.constant 240 : i32
    %11 = tpu.dynamic_rotate %10 by %c240_i32 dim 1 : vector<2x256xf32>, i32 -> vector<2x256xf32>
    %12 = vector.broadcast %6 : vector<1x256xf32> to vector<2x256xf32>
    %13 = arith.mulf %4, %12 : vector<2x256xf32>
    %c16_i32 = arith.constant 16 : i32
    %14 = tpu.dynamic_rotate %13 by %c16_i32 dim 1 : vector<2x256xf32>, i32 -> vector<2x256xf32>
    %15 = arith.addf %14, %11 : vector<2x256xf32>
    %16 = vector.broadcast %7 : vector<1x256xf32> to vector<2x256xf32>
    %17 = arith.mulf %4, %16 : vector<2x256xf32>
    %c255_i32 = arith.constant 255 : i32
    %18 = tpu.dynamic_rotate %17 by %c255_i32 dim 1 : vector<2x256xf32>, i32 -> vector<2x256xf32>
    %19 = arith.addf %15, %18 : vector<2x256xf32>
    %20 = vector.broadcast %8 : vector<1x256xf32> to vector<2x256xf32>
    %21 = arith.mulf %4, %20 : vector<2x256xf32>
    %c1_i32 = arith.constant 1 : i32
    %22 = tpu.dynamic_rotate %21 by %c1_i32 dim 1 : vector<2x256xf32>, i32 -> vector<2x256xf32>
    %23 = arith.addf %19, %22 : vector<2x256xf32>
    %24 = vector.broadcast %7 : vector<1x256xf32> to vector<2x256xf32>
    %25 = arith.mulf %15, %24 : vector<2x256xf32>
    %c255_i32_8 = arith.constant 255 : i32
    %26 = tpu.dynamic_rotate %25 by %c255_i32_8 dim 1 : vector<2x256xf32>, i32 -> vector<2x256xf32>
    %27 = vector.broadcast %8 : vector<1x256xf32> to vector<2x256xf32>
    %28 = arith.mulf %15, %27 : vector<2x256xf32>
    %c1_i32_9 = arith.constant 1 : i32
    %29 = tpu.dynamic_rotate %28 by %c1_i32_9 dim 1 : vector<2x256xf32>, i32 -> vector<2x256xf32>
    %30 = arith.addf %26, %29 : vector<2x256xf32>
    %c0_10 = arith.constant 0 : index
    %31 = memref.load %arg1[%c0_10] : memref<3xf32, #tpu.memory_space<smem>>
    %32 = vector.broadcast %31 : f32 to vector<2x256xf32>
    %33 = arith.mulf %32, %4 : vector<2x256xf32>
    %c1_11 = arith.constant 1 : index
    %34 = memref.load %arg1[%c1_11] : memref<3xf32, #tpu.memory_space<smem>>
    %35 = vector.broadcast %34 : f32 to vector<2x256xf32>
    %36 = arith.mulf %35, %23 : vector<2x256xf32>
    %37 = arith.addf %33, %36 : vector<2x256xf32>
    %c2_12 = arith.constant 2 : index
    %38 = memref.load %arg1[%c2_12] : memref<3xf32, #tpu.memory_space<smem>>
    %39 = vector.broadcast %38 : f32 to vector<2x256xf32>
    %40 = arith.mulf %39, %30 : vector<2x256xf32>
    %41 = arith.addf %37, %40 : vector<2x256xf32>
    %c0_13 = arith.constant 0 : index
    %42 = memref.load %arg2[%c0_13] : memref<3xf32, #tpu.memory_space<smem>>
    %43 = vector.broadcast %42 : f32 to vector<2x256xf32>
    %44 = arith.addf %41, %43 : vector<2x256xf32>
    %c0_14 = arith.constant 0 : index
    %c0_15 = arith.constant 0 : index
    %45 = vector.load %arg5[%c0_14, %c0_15] : memref<2x768xf32, #tpu.memory_space<vmem>>, vector<2x256xf32>
    tpu.vector_store %arg5[%c0_14, %c0_15], %44 {strides = array<i32>} : memref<2x768xf32, #tpu.memory_space<vmem>>, vector<2x256xf32>,
    %c1_16 = arith.constant 1 : index
    %46 = memref.load %arg2[%c1_16] : memref<3xf32, #tpu.memory_space<smem>>
    %47 = vector.broadcast %46 : f32 to vector<2x256xf32>
    %48 = arith.addf %41, %47 : vector<2x256xf32>
    %c0_17 = arith.constant 0 : index
    %c256_18 = arith.constant 256 : index
    %49 = vector.load %arg5[%c0_17, %c256_18] : memref<2x768xf32, #tpu.memory_space<vmem>>, vector<2x256xf32>
    tpu.vector_store %arg5[%c0_17, %c256_18], %48 {strides = array<i32>} : memref<2x768xf32, #tpu.memory_space<vmem>>, vector<2x256xf32>,
    %c2_19 = arith.constant 2 : index
    %50 = memref.load %arg2[%c2_19] : memref<3xf32, #tpu.memory_space<smem>>
    %51 = vector.broadcast %50 : f32 to vector<2x256xf32>
    %52 = arith.addf %41, %51 : vector<2x256xf32>
    %c0_20 = arith.constant 0 : index
    %c512_21 = arith.constant 512 : index
    %53 = vector.load %arg5[%c0_20, %c512_21] : memref<2x768xf32, #tpu.memory_space<vmem>>, vector<2x256xf32>
    tpu.vector_store %arg5[%c0_20, %c512_21], %52 {strides = array<i32>} : memref<2x768xf32, #tpu.memory_space<vmem>>, vector<2x256xf32>,
    return
  }
  func.func @transform_0(%arg0: i32) -> i32 {
    %c0_i32 = arith.constant 0 : i32
    %c0_i32_0 = arith.constant 0 : i32
    return %c0_i32 : i32
  }
  func.func @transform_1(%arg0: i32) -> i32 {
    %c0_i32 = arith.constant 0 : i32
    %c0_i32_0 = arith.constant 0 : i32
    return %c0_i32 : i32
  }
  func.func @transform_2(%arg0: i32) -> (i32, i32) {
    %c0_i32 = arith.constant 0 : i32
    %c0_i32_0 = arith.constant 0 : i32
    %c0_i32_1 = arith.constant 0 : i32
    return %c0_i32, %c0_i32_0 : i32, i32
  }
  func.func @transform_3(%arg0: i32) -> (i32, i32) {
    %c0_i32 = arith.constant 0 : i32
    %c0_i32_0 = arith.constant 0 : i32
    return %arg0, %c0_i32 : i32, i32
  }
  func.func @transform_4(%arg0: i32) -> (i32, i32) {
    %c0_i32 = arith.constant 0 : i32
    %c0_i32_0 = arith.constant 0 : i32
    return %arg0, %c0_i32 : i32, i32
  }
}

</mosaic_0001>

<llo_original>
// kernel: measurement_forward.1
$region0: #{measurement_forward.1}
  #allocation0 [shape = 'u32[]', space=smem, size = 0x4, offset = 0x4, fixed_abs, tag = 'smem constant byte address 0x4 - core index']
  #allocation1 [shape = 'u32[144,128]{1,0:T(1,128)}', space=vmem, size = 0x12000, scoped, tag = 'internal scratch']
  %s0 = inlined_call_operand.vmem [shape: f32[3], index: 0, kind: input, shape index: {}]
  %s1 = inlined_call_operand.vmem [shape: f32[3], index: 1, kind: input, shape index: {}]
  %s2 = inlined_call_operand.vmem [shape: f32[4,256], index: 2, kind: input, shape index: {}]
  %s3 = inlined_call_operand.vmem [shape: f32[2,768], index: 3, kind: input, shape index: {}]
  %s4 = inlined_call_operand.vmem [shape: f32[2,768], index: 4, kind: output, shape index: {}]
  %s5 = sld [smem:[#allocation0]]
  $region34: #{measurement_forward.1} parent=0
    _
  %s7 = ssub.s32 1, %s5
  %s8 = scalar_select 0, %s7, %s5
  $region1: #{measurement_forward.1} parent=0
    #allocation2 [shape = 'u8[512]{0}', space=smem, size = 0x200, scoped, tag = 'input window, operand 0, single buffered']
    #allocation3 [shape = 's32[1]{0}', space=sflag, size = 0x4, scoped, tag = 'scoped memory for measurement_forward.1']
    #allocation4 [shape = 'u8[512]{0}', space=smem, size = 0x200, scoped, tag = 'input window, operand 1, single buffered']
    #allocation5 [shape = 's32[1]{0}', space=sflag, size = 0x4, scoped, tag = 'scoped memory for measurement_forward.1']
    %9 = vsyncpa [#allocation3], 0
    %10 = vsyncpa [#allocation5], 0
    // Predicated region
    $region2: #{measurement_forward.1} parent=1 // pred_check
      _
    $region3: #{measurement_forward.1} parent=1 // pred_check_branch
      %12 = sbr.rel (0) target = $region5
    $region4: #{measurement_forward.1} parent=1 // pred_region
      %s14 = ssub.s32 16, 16
      %15 = vsyncadd [#allocation3], %s14
      %s17 = sshll.u32 %s0, 4
      %s18 = int_to_ptr.vmem [resolvable:$true] %s17
      %20 = dma.vmem_to_smem %s18, 16, [#allocation2], [#allocation3]
    $region5: #{measurement_forward.1} parent=1 // pred_fallthru
      _
    // Predicated region
    $region6: #{measurement_forward.1} parent=1 // pred_check
      _
    $region7: #{measurement_forward.1} parent=1 // pred_check_branch
      %22 = sbr.rel (0) target = $region9
    $region8: #{measurement_forward.1} parent=1 // pred_region
      %s24 = ssub.s32 16, 16
      %25 = vsyncadd [#allocation5], %s24
      %s27 = sshll.u32 %s1, 4
      %s28 = int_to_ptr.vmem [resolvable:$true] %s27
      %30 = dma.vmem_to_smem %s28, 16, [#allocation4], [#allocation5]
    $region9: #{measurement_forward.1} parent=1 // pred_fallthru
      _
    // Predicated region
    $region10: #{measurement_forward.1} parent=1 // pred_check
      _
    $region11: #{measurement_forward.1} parent=1 // pred_check_branch
      %32 = sbr.rel (0) target = $region13
    $region12: #{measurement_forward.1} parent=1 // pred_region
      _
    $region13: #{measurement_forward.1} parent=1 // pred_fallthru
      _
    // Predicated region
    $region14: #{measurement_forward.1} parent=1 // pred_check
      _
    $region15: #{measurement_forward.1} parent=1 // pred_check_branch
      %34 = sbr.rel (0) target = $region17
    $region16: #{measurement_forward.1} parent=1 // pred_region
      _
    $region17: #{measurement_forward.1} parent=1 // pred_fallthru
      _
    // Predicated region
    $region18: #{measurement_forward.1} parent=1 // pred_check
      _
    $region19: #{measurement_forward.1} parent=1 // pred_check_branch
      %36 = sbr.rel (0) target = $region21
    $region20: #{measurement_forward.1} parent=1 // pred_region
      %37 = dma.done [#allocation3], 16
    $region21: #{measurement_forward.1} parent=1 // pred_fallthru
      _
    // Predicated region
    $region22: #{measurement_forward.1} parent=1 // pred_check
      _
    $region23: #{measurement_forward.1} parent=1 // pred_check_branch
      %39 = sbr.rel (0) target = $region25
    $region24: #{measurement_forward.1} parent=1 // pred_region
      %40 = dma.done [#allocation5], 16
    $region25: #{measurement_forward.1} parent=1 // pred_fallthru
      _
    %41 = sfence
    %v42 = vld [vmem:[%s3] sm:$0xf]
    %v43 = vld [vmem:[%s3 + $0x4] sm:$0xf]
    %v44 = vadd.f32 %v42, %v43
    %v45 = vld [vmem:[%s3 + $0x8] sm:$0xf]
    %v46 = vadd.f32 %v44, %v45
    %v47 = vld [vmem:[%s2] ss:$4 sm:$0x3]
    %s48 = scalar_lea.vmem %s2, 1
    %v49 = vld [vmem:[%s48] ss:$4 sm:$0x3]
    %s50 = scalar_lea.vmem %s2, 2
    %v51 = vld [vmem:[%s50] ss:$4 sm:$0x3]
    %s52 = scalar_lea.vmem %s2, 3
    %v53 = vld [vmem:[%s52] ss:$4 sm:$0x3]
    %v55 = vlaneseq
    %v56 = vshrl.u32 %v55, 7
    %v57 = vsub.s32 0, %v56
    %v58 = vrot.slane %v47, %v57
    %v59 = vlaneseq
    %v60 = vshrl.u32 %v59, 7
    %v61 = vsub.s32 1, %v60
    %v62 = vrot.slane %v47, %v61
    %v63 = vcombine.low %v58, %v62
    %v65 = vunpack.c.l.s4 1983009808
    %v66 = vunpack.c.0.s8 %v65
    %v67 = vlaneseq
    %v68 = vshrl.u32 %v67, 7
    %v69 = vsub.s32 %v66, %v68
    %v70 = vrot.slane %v63, %v69
    %v72 = vmul.f32 %v46, %v70
    %v75 = vunpack.c.l.s4 1983009808
    %v76 = vunpack.c.0.s8 %v75
    %v77 = vlaneseq
    %v78 = vshrl.u32 %v77, 7
    %v79 = vsub.s32 %v76, %v78
    %v80 = vrot.slane %v72, %v79
    %v81 = vcombine.high %v80, %v80
    %84 = vrot.lane.b32.xlu0 %v80, 112
    %v85 = vpop.permute.xlu0 %84
    %86 = vrot.lane.b32.xlu0 %v81, 112
    %v87 = vpop.permute.xlu0 %86
    %v88 = vlaneseq
    %v89 = vand.u32 %v88, 127
    %vm90 = vcmp.lt.s32.totalorder %v89, 112
    %v91 = vsel %vm90, %v85, %v87
    %v92 = vsel %vm90, %v87, %v85
    %v94 = vlaneseq
    %v95 = vshrl.u32 %v94, 7
    %v96 = vsub.s32 0, %v95
    %v97 = vrot.slane %v49, %v96
    %v98 = vlaneseq
    %v99 = vshrl.u32 %v98, 7
    %v100 = vsub.s32 1, %v99
    %v101 = vrot.slane %v49, %v100
    %v102 = vcombine.low %v97, %v101
    %v104 = vunpack.c.l.s4 1983009808
    %v105 = vunpack.c.0.s8 %v104
    %v106 = vlaneseq
    %v107 = vshrl.u32 %v106, 7
    %v108 = vsub.s32 %v105, %v107
    %v109 = vrot.slane %v102, %v108
    %v111 = vmul.f32 %v46, %v109
    %v114 = vunpack.c.l.s4 1983009808
    %v115 = vunpack.c.0.s8 %v114
    %v116 = vlaneseq
    %v117 = vshrl.u32 %v116, 7
    %v118 = vsub.s32 %v115, %v117
    %v119 = vrot.slane %v111, %v118
    %v120 = vcombine.high %v119, %v119
    %123 = vrot.lane.b32.xlu0 %v119, 16
    %v124 = vpop.permute.xlu0 %123
    %125 = vrot.lane.b32.xlu0 %v120, 16
    %v126 = vpop.permute.xlu0 %125
    %vm127 = vcmp.lt.s32.totalorder %v89, 16
    %v128 = vsel %vm127, %v124, %v126
    %v129 = vsel %vm127, %v126, %v124
    %v130 = vadd.f32 %v129, %v91
    %v131 = vadd.f32 %v128, %v92
    %v133 = vlaneseq
    %v134 = vshrl.u32 %v133, 7
    %v135 = vsub.s32 0, %v134
    %v136 = vrot.slane %v51, %v135
    %v137 = vlaneseq
    %v138 = vshrl.u32 %v137, 7
    %v139 = vsub.s32 1, %v138
    %v140 = vrot.slane %v51, %v139
    %v143 = vcombine.low %v136, %v140
    %v145 = vunpack.c.l.s4 1983009808
    %v146 = vunpack.c.0.s8 %v145
    %v147 = vlaneseq
    %v148 = vshrl.u32 %v147, 7
    %v149 = vsub.s32 %v146, %v148
    %v150 = vrot.slane %v143, %v149
    %v152 = vmul.f32 %v46, %v150
    %v155 = vunpack.c.l.s4 1983009808
    %v156 = vunpack.c.0.s8 %v155
    %v157 = vlaneseq
    %v158 = vshrl.u32 %v157, 7
    %v159 = vsub.s32 %v156, %v158
    %v160 = vrot.slane %v152, %v159
    %v161 = vcombine.high %v160, %v160
    %164 = vrot.lane.b32.xlu0 %v160, 127
    %v165 = vpop.permute.xlu0 %164
    %166 = vrot.lane.b32.xlu0 %v161, 127
    %v167 = vpop.permute.xlu0 %166
    %vm168 = vcmp.lt.s32.totalorder %v89, 127
    %v169 = vsel %vm168, %v165, %v167
    %v170 = vsel %vm168, %v167, %v165
    %v171 = vadd.f32 %v130, %v169
    %v172 = vadd.f32 %v131, %v170
    %v174 = vlaneseq
    %v175 = vshrl.u32 %v174, 7
    %v176 = vsub.s32 0, %v175
    %v177 = vrot.slane %v53, %v176
    %v178 = vlaneseq
    %v179 = vshrl.u32 %v178, 7
    %v180 = vsub.s32 1, %v179
    %v181 = vrot.slane %v53, %v180
    %v184 = vcombine.low %v177, %v181
    %v186 = vunpack.c.l.s4 1983009808
    %v187 = vunpack.c.0.s8 %v186
    %v188 = vlaneseq
    %v189 = vshrl.u32 %v188, 7
    %v190 = vsub.s32 %v187, %v189
    %v191 = vrot.slane %v184, %v190
    %v193 = vmul.f32 %v46, %v191
    %v196 = vunpack.c.l.s4 1983009808
    %v197 = vunpack.c.0.s8 %v196
    %v198 = vlaneseq
    %v199 = vshrl.u32 %v198, 7
    %v200 = vsub.s32 %v197, %v199
    %v201 = vrot.slane %v193, %v200
    %v202 = vcombine.high %v201, %v201
    %205 = vrot.lane.b32.xlu0 %v201, 1
    %v206 = vpop.permute.xlu0 %205
    %207 = vrot.lane.b32.xlu0 %v202, 1
    %v208 = vpop.permute.xlu0 %207
    %vm209 = vcmp.lt.s32.totalorder %v89, 1
    %v210 = vsel %vm209, %v206, %v208
    %v211 = vsel %vm209, %v208, %v206
    %v212 = vadd.f32 %v171, %v211
    %v213 = vadd.f32 %v172, %v210
    %v214 = vmul.f32 %v130, %v136
    %v215 = vmul.f32 %v131, %v140
    %216 = vrot.lane.b32.xlu0 %v214, 127
    %v217 = vpop.permute.xlu0 %216
    %218 = vrot.lane.b32.xlu0 %v215, 127
    %v219 = vpop.permute.xlu0 %218
    %v220 = vsel %vm168, %v217, %v219
    %v221 = vsel %vm168, %v219, %v217
    %v222 = vmul.f32 %v130, %v177
    %v223 = vmul.f32 %v131, %v181
    %224 = vrot.lane.b32.xlu0 %v222, 1
    %v225 = vpop.permute.xlu0 %224
    %226 = vrot.lane.b32.xlu0 %v223, 1
    %v227 = vpop.permute.xlu0 %226
    %v228 = vsel %vm209, %v225, %v227
    %v229 = vsel %vm209, %v227, %v225
    %v230 = vadd.f32 %v220, %v229
    %v231 = vadd.f32 %v221, %v228
    %s232 = sld [smem:[#allocation2]]
    %v233 = vstv %s232
    %v234 = vmul.f32 %v233, %v46
    %s235 = sld [smem:[#allocation2 + $0x1]]
    %v236 = vstv %s235
    %v237 = vmul.f32 %v236, %v212
    %v238 = vmul.f32 %v236, %v213
    %v241 = vcombine.low %v237, %v238
    %v243 = vunpack.c.l.s4 1983009808
    %v244 = vunpack.c.0.s8 %v243
    %v245 = vlaneseq
    %v246 = vshrl.u32 %v245, 7
    %v247 = vsub.s32 %v244, %v246
    %v248 = vrot.slane %v241, %v247
    %v250 = vadd.f32 %v234, %v248
    %s251 = sld [smem:[#allocation2 + $0x2]]
    %v252 = vstv %s251
    %v253 = vmul.f32 %v252, %v230
    %v254 = vmul.f32 %v252, %v231
    %v257 = vcombine.low %v253, %v254
    %v259 = vunpack.c.l.s4 1983009808
    %v260 = vunpack.c.0.s8 %v259
    %v261 = vlaneseq
    %v262 = vshrl.u32 %v261, 7
    %v263 = vsub.s32 %v260, %v262
    %v264 = vrot.slane %v257, %v263
    %v266 = vadd.f32 %v250, %v264
    %s267 = sld [smem:[#allocation4]]
    %v268 = vstv %s267
    %v269 = vadd.f32 %v266, %v268
    %270 = vst [vmem:[%s4] sm:$0xf] %v269
    %s271 = sld [smem:[#allocation4 + $0x1]]
    %v272 = vstv %s271
    %v273 = vadd.f32 %v266, %v272
    %274 = vst [vmem:[%s4 + $0x4] sm:$0xf] %v273
    %s275 = sld [smem:[#allocation4 + $0x2]]
    %v276 = vstv %s275
    %v277 = vadd.f32 %v266, %v276
    %278 = vst [vmem:[%s4 + $0x8] sm:$0xf] %v277
    // Predicated region
    $region26: #{measurement_forward.1} parent=1 // pred_check
      _
    $region27: #{measurement_forward.1} parent=1 // pred_check_branch
      %280 = sbr.rel (0) target = $region29
    $region28: #{measurement_forward.1} parent=1 // pred_region
      _
    $region29: #{measurement_forward.1} parent=1 // pred_fallthru
      _
    // Predicated region
    $region30: #{measurement_forward.1} parent=1 // pred_check
      _
    $region31: #{measurement_forward.1} parent=1 // pred_check_branch
      %282 = sbr.rel (0) target = $region33
    $region32: #{measurement_forward.1} parent=1 // pred_region
      _
    $region33: #{measurement_forward.1} parent=1 // pred_fallthru
      _
    %283 = vsyncpa [#allocation3], 1
    %284 = vsyncpa [#allocation5], 1

</llo_original>
